<compile_context>
chip_gen: v7x
topology: tpu7x:2x2x1
jax: 0.10.0
libtpu: 0.0.40
codegen_flags: <defaults>
</compile_context>

<pallas_src>
import functools

import numpy as np
import jax
import jax.numpy as jnp
from jax import lax
from jax.experimental import pallas as pl
from jax.experimental.pallas import tpu as pltpu


# ----------------------------- generators ----------------------------------

def _build_generators_np() -> np.ndarray:
    gens = np.array(
        [[[1, 0, 1], [0, -1, -1], [0, 1, 0]],
         [[0, 1, 0], [0, 0, 1], [1, 0, 0]],
         [[0, 1, 0], [1, 0, 0], [-1, -1, -1]]],
        dtype=np.float64,
    )
    invs = np.round(np.linalg.inv(gens))   # unimodular -> exact integer inverses
    return np.concatenate([gens, invs], axis=0).astype(np.float32)   # (6, 3, 3)


_GENS_NP = _build_generators_np()
GENERATORS = jnp.asarray(_GENS_NP)          # (6, 3, 3) f32, non-trainable buffer
NUM_GENERATORS = int(_GENS_NP.shape[0])     # 6

# Deduplicate: inv(g2) == g2, so only 5 distinct matrices need one-hot masks.
_DIST_MATS: list[np.ndarray] = []
_DIST_OF_IDX: list[int] = []
for _j in range(NUM_GENERATORS):
    for _d, _M in enumerate(_DIST_MATS):
        if np.array_equal(_M, _GENS_NP[_j]):
            _DIST_OF_IDX.append(_d)
            break
    else:
        _DIST_OF_IDX.append(len(_DIST_MATS))
        _DIST_MATS.append(_GENS_NP[_j])
_NUM_DISTINCT = len(_DIST_MATS)
# _MEMBERS[d] = tuple of raw generator indices mapping to distinct matrix d.
_MEMBERS = tuple(
    tuple(j for j in range(NUM_GENERATORS) if _DIST_OF_IDX[j] == d)
    for d in range(_NUM_DISTINCT))
# _DIST_ELEMS[p][d] = element p (row-major 3x3) of distinct matrix d, in {-1,0,1}.
_DIST_ELEMS = tuple(
    tuple(int(_DIST_MATS[d][p // 3, p % 3]) for d in range(_NUM_DISTINCT))
    for p in range(9))
assert all(v in (-1, 0, 1) for row in _DIST_ELEMS for v in row)


# ------------------------------- kernel -------------------------------------

_SUB = 8                  # sublanes per strip
_LANES = 128              # lanes per strip  -> one vreg per (8,128) plane
_STRIP = _SUB * _LANES    # 1024 matrices per strip


def _sl3z_kernel(perm_ref, idx_ref, o_ref, *, n_leaves: int, n_strips: int):
    """perm_ref: SMEM (n_leaves,) i32 bit-reversal permutation (fold order).
       idx_ref:  VMEM (n_leaves, n_strips*8, 128) i32 generator indices.
       o_ref:    VMEM (9, n_strips*8, 128) f32 output element-planes."""

    for s in range(n_strips):                       # static strip-mine
        rows = pl.ds(s * _SUB, _SUB)

        def gather(src):
            # 9 element-planes of generators[idx], each (8,128) int32 (exact).
            idx = idx_ref[src, rows, :]
            onehot = []
            for d in range(_NUM_DISTINCT):
                m = idx == _MEMBERS[d][0]
                for j in _MEMBERS[d][1:]:           # inv(g2)==g2 -> shared mask
                    m = jnp.logical_or(m, idx == j)
                onehot.append(jnp.where(m, 1, 0).astype(jnp.int32))
            planes = []
            for p in range(9):
                acc = None
                for d in range(_NUM_DISTINCT):
                    v = _DIST_ELEMS[p][d]
                    if v == 0:
                        continue                    # zero entries cost nothing
                    t = onehot[d]
                    if acc is None:
                        acc = t if v > 0 else -t
                    elif v > 0:
                        acc = acc + t
                    else:
                        acc = acc - t
                planes.append(acc if acc is not None
                              else jnp.zeros_like(onehot[0]))
            return planes

        def fold_body(t, acc):
            # acc <- acc @ generators[idx[perm[t]]]   (lane-parallel 3x3 matmul)
            b = gather(perm_ref[t])
            return [acc[3 * r + 0] * b[0 + c]
                    + acc[3 * r + 1] * b[3 + c]
                    + acc[3 * r + 2] * b[6 + c]
                    for r in range(3) for c in range(3)]

        # TODO(synk): a moderate fori_loop unroll would give the LLO scheduler
        # more visibility; kept rolled to keep compile/interpret time tiny.
        acc = gather(perm_ref[0])
        if n_leaves > 1:
            acc = lax.fori_loop(1, n_leaves, fold_body, acc)

        for p in range(9):
            o_ref[p, rows, :] = acc[p].astype(jnp.float32)


# ------------------------------- wrapper -------------------------------------

def _bit_reverse_perm(e: int) -> np.ndarray:
    n = 1 << e
    perm = np.zeros(n, dtype=np.int32)
    for j in range(n):
        r, x = 0, j
        for _ in range(e):
            r = (r << 1) | (x & 1)
            x >>= 1
        perm[j] = r
    return perm


def sl3z_products(g_idx: jnp.ndarray, batch_size: int, e: int) -> jnp.ndarray:
    """Pallas product of generators[g_idx] with the PyTorch tree semantics."""
    n = 1 << e
    assert g_idx.shape == (batch_size * n,)

    total_strips = max(1, -(-batch_size // _STRIP))
    # >=2 grid tiles whenever there are >=2 strips (v7x megacore); pack several
    # strips per tile once there is enough work to amortize per-step overhead.
    strips_per_tile = 4 if total_strips >= 8 else 1
    num_tiles = -(-total_strips // strips_per_tile)
    rows_per_tile = strips_per_tile * _SUB
    rows_total = num_tiles * rows_per_tile
    b_pad = rows_total * _LANES

    # Leaf-major layout: idx[m, i] = g_idx[m*batch + i].  The bit-reversal is
    # applied inside the kernel via the SMEM perm table (no HBM gather pass).
    # TODO(synk): int8 indices would cut index DMA 4x; kept int32 for native
    # (8,128) tiling.  In-kernel pltpu.prng_random_bits could drop the index
    # array entirely but would change the random stream vs torch.randint.
    idx = g_idx.astype(jnp.int32).reshape(n, batch_size)
    if b_pad != batch_size:
        idx = jnp.pad(idx, ((0, 0), (0, b_pad - batch_size)))   # pad -> gen 0
    idx = idx.reshape(n, rows_total, _LANES)

    perm = jnp.asarray(_bit_reverse_perm(e))                    # (n,) int32

    out = pl.pallas_call(
        functools.partial(_sl3z_kernel, n_leaves=n, n_strips=strips_per_tile),
        out_shape=jax.ShapeDtypeStruct((9, rows_total, _LANES), jnp.float32),
        grid_spec=pltpu.PrefetchScalarGridSpec(
            num_scalar_prefetch=1,
            grid=(num_tiles,),
            in_specs=[pl.BlockSpec((n, rows_per_tile, _LANES),
                                   lambda i, perm: (0, i, 0))],
            out_specs=pl.BlockSpec((9, rows_per_tile, _LANES),
                                   lambda i, perm: (0, i, 0)),
        ),
        compiler_params=pltpu.CompilerParams(
            dimension_semantics=("parallel",)),
    )(perm, idx)

    # (9, rows, lanes) -> (batch, 3, 3).
    # TODO(synk): flexible consumers could take the lane-dense (9, N) planes
    # directly and skip this narrow transpose.
    return out.reshape(9, b_pad).T[:batch_size].reshape(batch_size, 3, 3)


def random_matrix_sl3z(key, batch_size: int, e: int = 5) -> jnp.ndarray:
    """Pallas implementation of RandomMatrixSL3Z.forward(batch_size, e)."""
    n = 1 << e
    g_idx = jax.random.randint(key, (batch_size * n,), 0, NUM_GENERATORS,
                               dtype=jnp.int32)
    return sl3z_products(g_idx, batch_size, e)


def _reference(g_idx: jnp.ndarray, e: int) -> jnp.ndarray:
    """Pure-JAX mirror of the PyTorch forward, for verification."""
    m = GENERATORS[g_idx]
    for _ in range(e):
        m = m.reshape(2, -1, 3, 3)
        m = jnp.einsum("bij,bjk->bik", m[0], m[1],
                       preferred_element_type=jnp.float32)
    return jnp.round(m)


if __name__ == "__main__":
    # Module defaults: forward(batch_size=2, e=5)  -> 64 sampled generators.
    batch_size, e = 2, 5
    key = jax.random.PRNGKey(0)
    g_idx = jax.random.randint(key, (batch_size * (1 << e),), 0,
                               NUM_GENERATORS, dtype=jnp.int32)

    result = jax.block_until_ready(sl3z_products(g_idx, batch_size, e))
    ref = jax.block_until_ready(_reference(g_idx, e))

    assert result.shape == (batch_size, 3, 3), result.shape
    assert result.dtype == jnp.float32, result.dtype
    # Products of these generators are exact small integers -> exact match.
    np.testing.assert_array_equal(np.asarray(result), np.asarray(ref))
    dets = np.linalg.det(np.asarray(result, dtype=np.float64))
    np.testing.assert_allclose(dets, np.ones(batch_size), atol=1e-6)

    print("KERNEL_OK")
</pallas_src>

<mosaic_0001>
module attributes {stable_mosaic.version = 11 : i64} {
  func.func @_sl3z_kernel(%arg0: i32, %arg1: memref<32xi32, #tpu.memory_space<smem>>, %arg2: memref<32x8x128xi32, #tpu.memory_space<vmem>>, %arg3: memref<9x8x128xf32, #tpu.memory_space<vmem>>) attributes {dimension_semantics = [#tpu.dimension_semantics<parallel>], iteration_bounds = array<i64: 1>, scalar_prefetch = 1 : i64, scratch_operands = 0 : i64, tpu.core_type = #tpu.core_type<tc>, window_params = [{transform_indices = @transform_0, window_bounds = array<i64: 32, 8, 128>}, {transform_indices = @transform_1, window_bounds = array<i64: 9, 8, 128>}]} {
    %c0 = arith.constant 0 : index
    %0 = memref.load %arg1[%c0] : memref<32xi32, #tpu.memory_space<smem>>
    %1 = arith.index_cast %0 : i32 to index
    %c0_0 = arith.constant 0 : index
    %c0_1 = arith.constant 0 : index
    %2 = vector.load %arg2[%1, %c0_0, %c0_1] : memref<32x8x128xi32, #tpu.memory_space<vmem>>, vector<1x8x128xi32>
    %3 = vector.shape_cast %2 : vector<1x8x128xi32> to vector<8x128xi32>
    %c0_i32 = arith.constant 0 : i32
    %4 = vector.broadcast %c0_i32 : i32 to vector<8x128xi32>
    %5 = arith.cmpi eq, %3, %4 : vector<8x128xi32>
    %c1_i32 = arith.constant 1 : i32
    %c0_i32_2 = arith.constant 0 : i32
    %6 = vector.broadcast %c1_i32 : i32 to vector<8x128xi32>
    %7 = vector.broadcast %c0_i32_2 : i32 to vector<8x128xi32>
    %8 = arith.select %5, %6, %7 : vector<8x128xi1>, vector<8x128xi32>
    %c1_i32_3 = arith.constant 1 : i32
    %9 = vector.broadcast %c1_i32_3 : i32 to vector<8x128xi32>
    %10 = arith.cmpi eq, %3, %9 : vector<8x128xi32>
    %c1_i32_4 = arith.constant 1 : i32
    %c0_i32_5 = arith.constant 0 : i32
    %11 = vector.broadcast %c1_i32_4 : i32 to vector<8x128xi32>
    %12 = vector.broadcast %c0_i32_5 : i32 to vector<8x128xi32>
    %13 = arith.select %10, %11, %12 : vector<8x128xi1>, vector<8x128xi32>
    %c2_i32 = arith.constant 2 : i32
    %14 = vector.broadcast %c2_i32 : i32 to vector<8x128xi32>
    %15 = arith.cmpi eq, %3, %14 : vector<8x128xi32>
    %c5_i32 = arith.constant 5 : i32
    %16 = vector.broadcast %c5_i32 : i32 to vector<8x128xi32>
    %17 = arith.cmpi eq, %3, %16 : vector<8x128xi32>
    %18 = arith.ori %15, %17 : vector<8x128xi1>
    %c1_i32_6 = arith.constant 1 : i32
    %c0_i32_7 = arith.constant 0 : i32
    %19 = vector.broadcast %c1_i32_6 : i32 to vector<8x128xi32>
    %20 = vector.broadcast %c0_i32_7 : i32 to vector<8x128xi32>
    %21 = arith.select %18, %19, %20 : vector<8x128xi1>, vector<8x128xi32>
    %c3_i32 = arith.constant 3 : i32
    %22 = vector.broadcast %c3_i32 : i32 to vector<8x128xi32>
    %23 = arith.cmpi eq, %3, %22 : vector<8x128xi32>
    %c1_i32_8 = arith.constant 1 : i32
    %c0_i32_9 = arith.constant 0 : i32
    %24 = vector.broadcast %c1_i32_8 : i32 to vector<8x128xi32>
    %25 = vector.broadcast %c0_i32_9 : i32 to vector<8x128xi32>
    %26 = arith.select %23, %24, %25 : vector<8x128xi1>, vector<8x128xi32>
    %c4_i32 = arith.constant 4 : i32
    %27 = vector.broadcast %c4_i32 : i32 to vector<8x128xi32>
    %28 = arith.cmpi eq, %3, %27 : vector<8x128xi32>
    %c1_i32_10 = arith.constant 1 : i32
    %c0_i32_11 = arith.constant 0 : i32
    %29 = vector.broadcast %c1_i32_10 : i32 to vector<8x128xi32>
    %30 = vector.broadcast %c0_i32_11 : i32 to vector<8x128xi32>
    %31 = arith.select %28, %29, %30 : vector<8x128xi1>, vector<8x128xi32>
    %32 = arith.addi %8, %26 : vector<8x128xi32>
    %33 = arith.addi %13, %21 : vector<8x128xi32>
    %34 = arith.addi %33, %26 : vector<8x128xi32>
    %35 = arith.addi %8, %26 : vector<8x128xi32>
    %36 = arith.addi %35, %31 : vector<8x128xi32>
    %37 = arith.addi %21, %31 : vector<8x128xi32>
    %c0_i32_12 = arith.constant 0 : i32
    %38 = vector.broadcast %c0_i32_12 : i32 to vector<8x128xi32>
    %39 = arith.subi %38, %8 : vector<8x128xi32>
    %c0_i32_13 = arith.constant 0 : i32
    %40 = vector.broadcast %c0_i32_13 : i32 to vector<8x128xi32>
    %41 = arith.subi %40, %8 : vector<8x128xi32>
    %42 = arith.addi %41, %13 : vector<8x128xi32>
    %43 = arith.addi %42, %26 : vector<8x128xi32>
    %44 = arith.subi %13, %21 : vector<8x128xi32>
    %45 = arith.subi %8, %21 : vector<8x128xi32>
    %46 = arith.subi %45, %26 : vector<8x128xi32>
    %47 = arith.addi %46, %31 : vector<8x128xi32>
    %c0_i32_14 = arith.constant 0 : i32
    %48 = vector.broadcast %c0_i32_14 : i32 to vector<8x128xi32>
    %49 = arith.subi %48, %21 : vector<8x128xi32>
    %50 = arith.subi %49, %26 : vector<8x128xi32>
    %c1_i32_15 = arith.constant 1 : i32
    %c31_i32 = arith.constant 31 : i32
    %51 = arith.addi %c1_i32_15, %c31_i32 : i32
    %c1_i32_16 = arith.constant 1 : i32
    %52:9 = scf.for %arg4 = %c1_i32_15 to %51 step %c1_i32_16 iter_args(%arg5 = %32, %arg6 = %34, %arg7 = %36, %arg8 = %37, %arg9 = %39, %arg10 = %43, %arg11 = %44, %arg12 = %47, %arg13 = %50) -> (vector<8x128xi32>, vector<8x128xi32>, vector<8x128xi32>, vector<8x128xi32>, vector<8x128xi32>, vector<8x128xi32>, vector<8x128xi32>, vector<8x128xi32>, vector<8x128xi32>)  : i32 {
      %89 = arith.index_cast %arg4 : i32 to index
      %90 = memref.load %arg1[%89] : memref<32xi32, #tpu.memory_space<smem>>
      %91 = arith.index_cast %90 : i32 to index
      %c0_37 = arith.constant 0 : index
      %c0_38 = arith.constant 0 : index
      %92 = vector.load %arg2[%91, %c0_37, %c0_38] : memref<32x8x128xi32, #tpu.memory_space<vmem>>, vector<1x8x128xi32>
      %93 = vector.shape_cast %92 : vector<1x8x128xi32> to vector<8x128xi32>
      %c0_i32_39 = arith.constant 0 : i32
      %94 = vector.broadcast %c0_i32_39 : i32 to vector<8x128xi32>
      %95 = arith.cmpi eq, %93, %94 : vector<8x128xi32>
      %c1_i32_40 = arith.constant 1 : i32
      %c0_i32_41 = arith.constant 0 : i32
      %96 = vector.broadcast %c1_i32_40 : i32 to vector<8x128xi32>
      %97 = vector.broadcast %c0_i32_41 : i32 to vector<8x128xi32>
      %98 = arith.select %95, %96, %97 : vector<8x128xi1>, vector<8x128xi32>
      %c1_i32_42 = arith.constant 1 : i32
      %99 = vector.broadcast %c1_i32_42 : i32 to vector<8x128xi32>
      %100 = arith.cmpi eq, %93, %99 : vector<8x128xi32>
      %c1_i32_43 = arith.constant 1 : i32
      %c0_i32_44 = arith.constant 0 : i32
      %101 = vector.broadcast %c1_i32_43 : i32 to vector<8x128xi32>
      %102 = vector.broadcast %c0_i32_44 : i32 to vector<8x128xi32>
      %103 = arith.select %100, %101, %102 : vector<8x128xi1>, vector<8x128xi32>
      %c2_i32_45 = arith.constant 2 : i32
      %104 = vector.broadcast %c2_i32_45 : i32 to vector<8x128xi32>
      %105 = arith.cmpi eq, %93, %104 : vector<8x128xi32>
      %c5_i32_46 = arith.constant 5 : i32
      %106 = vector.broadcast %c5_i32_46 : i32 to vector<8x128xi32>
      %107 = arith.cmpi eq, %93, %106 : vector<8x128xi32>
      %108 = arith.ori %105, %107 : vector<8x128xi1>
      %c1_i32_47 = arith.constant 1 : i32
      %c0_i32_48 = arith.constant 0 : i32
      %109 = vector.broadcast %c1_i32_47 : i32 to vector<8x128xi32>
      %110 = vector.broadcast %c0_i32_48 : i32 to vector<8x128xi32>
      %111 = arith.select %108, %109, %110 : vector<8x128xi1>, vector<8x128xi32>
      %c3_i32_49 = arith.constant 3 : i32
      %112 = vector.broadcast %c3_i32_49 : i32 to vector<8x128xi32>
      %113 = arith.cmpi eq, %93, %112 : vector<8x128xi32>
      %c1_i32_50 = arith.constant 1 : i32
      %c0_i32_51 = arith.constant 0 : i32
      %114 = vector.broadcast %c1_i32_50 : i32 to vector<8x128xi32>
      %115 = vector.broadcast %c0_i32_51 : i32 to vector<8x128xi32>
      %116 = arith.select %113, %114, %115 : vector<8x128xi1>, vector<8x128xi32>
      %c4_i32_52 = arith.constant 4 : i32
      %117 = vector.broadcast %c4_i32_52 : i32 to vector<8x128xi32>
      %118 = arith.cmpi eq, %93, %117 : vector<8x128xi32>
      %c1_i32_53 = arith.constant 1 : i32
      %c0_i32_54 = arith.constant 0 : i32
      %119 = vector.broadcast %c1_i32_53 : i32 to vector<8x128xi32>
      %120 = vector.broadcast %c0_i32_54 : i32 to vector<8x128xi32>
      %121 = arith.select %118, %119, %120 : vector<8x128xi1>, vector<8x128xi32>
      %122 = arith.addi %98, %116 : vector<8x128xi32>
      %123 = arith.addi %103, %111 : vector<8x128xi32>
      %124 = arith.addi %123, %116 : vector<8x128xi32>
      %125 = arith.addi %98, %116 : vector<8x128xi32>
      %126 = arith.addi %125, %121 : vector<8x128xi32>
      %127 = arith.addi %111, %121 : vector<8x128xi32>
      %c0_i32_55 = arith.constant 0 : i32
      %128 = vector.broadcast %c0_i32_55 : i32 to vector<8x128xi32>
      %129 = arith.subi %128, %98 : vector<8x128xi32>
      %c0_i32_56 = arith.constant 0 : i32
      %130 = vector.broadcast %c0_i32_56 : i32 to vector<8x128xi32>
      %131 = arith.subi %130, %98 : vector<8x128xi32>
      %132 = arith.addi %131, %103 : vector<8x128xi32>
      %133 = arith.addi %132, %116 : vector<8x128xi32>
      %134 = arith.subi %103, %111 : vector<8x128xi32>
      %135 = arith.subi %98, %111 : vector<8x128xi32>
      %136 = arith.subi %135, %116 : vector<8x128xi32>
      %137 = arith.addi %136, %121 : vector<8x128xi32>
      %c0_i32_57 = arith.constant 0 : i32
      %138 = vector.broadcast %c0_i32_57 : i32 to vector<8x128xi32>
      %139 = arith.subi %138, %111 : vector<8x128xi32>
      %140 = arith.subi %139, %116 : vector<8x128xi32>
      %141 = arith.muli %arg5, %122 : vector<8x128xi32>
      %142 = arith.muli %arg6, %127 : vector<8x128xi32>
      %143 = arith.addi %141, %142 : vector<8x128xi32>
      %144 = arith.muli %arg7, %134 : vector<8x128xi32>
      %145 = arith.addi %143, %144 : vector<8x128xi32>
      %146 = arith.muli %arg5, %124 : vector<8x128xi32>
      %147 = arith.muli %arg6, %129 : vector<8x128xi32>
      %148 = arith.addi %146, %147 : vector<8x128xi32>
      %149 = arith.muli %arg7, %137 : vector<8x128xi32>
      %150 = arith.addi %148, %149 : vector<8x128xi32>
      %151 = arith.muli %arg5, %126 : vector<8x128xi32>
      %152 = arith.muli %arg6, %133 : vector<8x128xi32>
      %153 = arith.addi %151, %152 : vector<8x128xi32>
      %154 = arith.muli %arg7, %140 : vector<8x128xi32>
      %155 = arith.addi %153, %154 : vector<8x128xi32>
      %156 = arith.muli %arg8, %122 : vector<8x128xi32>
      %157 = arith.muli %arg9, %127 : vector<8x128xi32>
      %158 = arith.addi %156, %157 : vector<8x128xi32>
      %159 = arith.muli %arg10, %134 : vector<8x128xi32>
      %160 = arith.addi %158, %159 : vector<8x128xi32>
      %161 = arith.muli %arg8, %124 : vector<8x128xi32>
      %162 = arith.muli %arg9, %129 : vector<8x128xi32>
      %163 = arith.addi %161, %162 : vector<8x128xi32>
      %164 = arith.muli %arg10, %137 : vector<8x128xi32>
      %165 = arith.addi %163, %164 : vector<8x128xi32>
      %166 = arith.muli %arg8, %126 : vector<8x128xi32>
      %167 = arith.muli %arg9, %133 : vector<8x128xi32>
      %168 = arith.addi %166, %167 : vector<8x128xi32>
      %169 = arith.muli %arg10, %140 : vector<8x128xi32>
      %170 = arith.addi %168, %169 : vector<8x128xi32>
      %171 = arith.muli %arg11, %122 : vector<8x128xi32>
      %172 = arith.muli %arg12, %127 : vector<8x128xi32>
      %173 = arith.addi %171, %172 : vector<8x128xi32>
      %174 = arith.muli %arg13, %134 : vector<8x128xi32>
      %175 = arith.addi %173, %174 : vector<8x128xi32>
      %176 = arith.muli %arg11, %124 : vector<8x128xi32>
      %177 = arith.muli %arg12, %129 : vector<8x128xi32>
      %178 = arith.addi %176, %177 : vector<8x128xi32>
      %179 = arith.muli %arg13, %137 : vector<8x128xi32>
      %180 = arith.addi %178, %179 : vector<8x128xi32>
      %181 = arith.muli %arg11, %126 : vector<8x128xi32>
      %182 = arith.muli %arg12, %133 : vector<8x128xi32>
      %183 = arith.addi %181, %182 : vector<8x128xi32>
      %184 = arith.muli %arg13, %140 : vector<8x128xi32>
      %185 = arith.addi %183, %184 : vector<8x128xi32>
      scf.yield %145, %150, %155, %160, %165, %170, %175, %180, %185 : vector<8x128xi32>, vector<8x128xi32>, vector<8x128xi32>, vector<8x128xi32>, vector<8x128xi32>, vector<8x128xi32>, vector<8x128xi32>, vector<8x128xi32>, vector<8x128xi32>
    }
    %c31_i32_17 = arith.constant 31 : i32
    %53 = arith.sitofp %52#0 : vector<8x128xi32> to vector<8x128xf32>
    %c0_18 = arith.constant 0 : index
    %c0_19 = arith.constant 0 : index
    %c0_20 = arith.constant 0 : index
    %54 = vector.load %arg3[%c0_18, %c0_19, %c0_20] : memref<9x8x128xf32, #tpu.memory_space<vmem>>, vector<1x8x128xf32>
    %55 = vector.shape_cast %54 : vector<1x8x128xf32> to vector<8x128xf32>
    %56 = vector.shape_cast %53 : vector<8x128xf32> to vector<1x8x128xf32>
    tpu.vector_store %arg3[%c0_18, %c0_19, %c0_20], %56 {strides = array<i32>} : memref<9x8x128xf32, #tpu.memory_space<vmem>>, vector<1x8x128xf32>,
    %57 = arith.sitofp %52#1 : vector<8x128xi32> to vector<8x128xf32>
    %c1 = arith.constant 1 : index
    %c0_21 = arith.constant 0 : index
    %c0_22 = arith.constant 0 : index
    %58 = vector.load %arg3[%c1, %c0_21, %c0_22] : memref<9x8x128xf32, #tpu.memory_space<vmem>>, vector<1x8x128xf32>
    %59 = vector.shape_cast %58 : vector<1x8x128xf32> to vector<8x128xf32>
    %60 = vector.shape_cast %57 : vector<8x128xf32> to vector<1x8x128xf32>
    tpu.vector_store %arg3[%c1, %c0_21, %c0_22], %60 {strides = array<i32>} : memref<9x8x128xf32, #tpu.memory_space<vmem>>, vector<1x8x128xf32>,
    %61 = arith.sitofp %52#2 : vector<8x128xi32> to vector<8x128xf32>
    %c2 = arith.constant 2 : index
    %c0_23 = arith.constant 0 : index
    %c0_24 = arith.constant 0 : index
    %62 = vector.load %arg3[%c2, %c0_23, %c0_24] : memref<9x8x128xf32, #tpu.memory_space<vmem>>, vector<1x8x128xf32>
    %63 = vector.shape_cast %62 : vector<1x8x128xf32> to vector<8x128xf32>
    %64 = vector.shape_cast %61 : vector<8x128xf32> to vector<1x8x128xf32>
    tpu.vector_store %arg3[%c2, %c0_23, %c0_24], %64 {strides = array<i32>} : memref<9x8x128xf32, #tpu.memory_space<vmem>>, vector<1x8x128xf32>,
    %65 = arith.sitofp %52#3 : vector<8x128xi32> to vector<8x128xf32>
    %c3 = arith.constant 3 : index
    %c0_25 = arith.constant 0 : index
    %c0_26 = arith.constant 0 : index
    %66 = vector.load %arg3[%c3, %c0_25, %c0_26] : memref<9x8x128xf32, #tpu.memory_space<vmem>>, vector<1x8x128xf32>
    %67 = vector.shape_cast %66 : vector<1x8x128xf32> to vector<8x128xf32>
    %68 = vector.shape_cast %65 : vector<8x128xf32> to vector<1x8x128xf32>
    tpu.vector_store %arg3[%c3, %c0_25, %c0_26], %68 {strides = array<i32>} : memref<9x8x128xf32, #tpu.memory_space<vmem>>, vector<1x8x128xf32>,
    %69 = arith.sitofp %52#4 : vector<8x128xi32> to vector<8x128xf32>
    %c4 = arith.constant 4 : index
    %c0_27 = arith.constant 0 : index
    %c0_28 = arith.constant 0 : index
    %70 = vector.load %arg3[%c4, %c0_27, %c0_28] : memref<9x8x128xf32, #tpu.memory_space<vmem>>, vector<1x8x128xf32>
    %71 = vector.shape_cast %70 : vector<1x8x128xf32> to vector<8x128xf32>
    %72 = vector.shape_cast %69 : vector<8x128xf32> to vector<1x8x128xf32>
    tpu.vector_store %arg3[%c4, %c0_27, %c0_28], %72 {strides = array<i32>} : memref<9x8x128xf32, #tpu.memory_space<vmem>>, vector<1x8x128xf32>,
    %73 = arith.sitofp %52#5 : vector<8x128xi32> to vector<8x128xf32>
    %c5 = arith.constant 5 : index
    %c0_29 = arith.constant 0 : index
    %c0_30 = arith.constant 0 : index
    %74 = vector.load %arg3[%c5, %c0_29, %c0_30] : memref<9x8x128xf32, #tpu.memory_space<vmem>>, vector<1x8x128xf32>
    %75 = vector.shape_cast %74 : vector<1x8x128xf32> to vector<8x128xf32>
    %76 = vector.shape_cast %73 : vector<8x128xf32> to vector<1x8x128xf32>
    tpu.vector_store %arg3[%c5, %c0_29, %c0_30], %76 {strides = array<i32>} : memref<9x8x128xf32, #tpu.memory_space<vmem>>, vector<1x8x128xf32>,
    %77 = arith.sitofp %52#6 : vector<8x128xi32> to vector<8x128xf32>
    %c6 = arith.constant 6 : index
    %c0_31 = arith.constant 0 : index
    %c0_32 = arith.constant 0 : index
    %78 = vector.load %arg3[%c6, %c0_31, %c0_32] : memref<9x8x128xf32, #tpu.memory_space<vmem>>, vector<1x8x128xf32>
    %79 = vector.shape_cast %78 : vector<1x8x128xf32> to vector<8x128xf32>
    %80 = vector.shape_cast %77 : vector<8x128xf32> to vector<1x8x128xf32>
    tpu.vector_store %arg3[%c6, %c0_31, %c0_32], %80 {strides = array<i32>} : memref<9x8x128xf32, #tpu.memory_space<vmem>>, vector<1x8x128xf32>,
    %81 = arith.sitofp %52#7 : vector<8x128xi32> to vector<8x128xf32>
    %c7 = arith.constant 7 : index
    %c0_33 = arith.constant 0 : index
    %c0_34 = arith.constant 0 : index
    %82 = vector.load %arg3[%c7, %c0_33, %c0_34] : memref<9x8x128xf32, #tpu.memory_space<vmem>>, vector<1x8x128xf32>
    %83 = vector.shape_cast %82 : vector<1x8x128xf32> to vector<8x128xf32>
    %84 = vector.shape_cast %81 : vector<8x128xf32> to vector<1x8x128xf32>
    tpu.vector_store %arg3[%c7, %c0_33, %c0_34], %84 {strides = array<i32>} : memref<9x8x128xf32, #tpu.memory_space<vmem>>, vector<1x8x128xf32>,
    %85 = arith.sitofp %52#8 : vector<8x128xi32> to vector<8x128xf32>
    %c8 = arith.constant 8 : index
    %c0_35 = arith.constant 0 : index
    %c0_36 = arith.constant 0 : index
    %86 = vector.load %arg3[%c8, %c0_35, %c0_36] : memref<9x8x128xf32, #tpu.memory_space<vmem>>, vector<1x8x128xf32>
    %87 = vector.shape_cast %86 : vector<1x8x128xf32> to vector<8x128xf32>
    %88 = vector.shape_cast %85 : vector<8x128xf32> to vector<1x8x128xf32>
    tpu.vector_store %arg3[%c8, %c0_35, %c0_36], %88 {strides = array<i32>} : memref<9x8x128xf32, #tpu.memory_space<vmem>>, vector<1x8x128xf32>,
    return
  }
  func.func @transform_0(%arg0: i32, %arg1: memref<32xi32, #tpu.memory_space<smem>>) -> (i32, i32, i32) {
    %c0_i32 = arith.constant 0 : i32
    %c0_i32_0 = arith.constant 0 : i32
    %c0_i32_1 = arith.constant 0 : i32
    return %c0_i32, %arg0, %c0_i32_0 : i32, i32, i32
  }
  func.func @transform_1(%arg0: i32, %arg1: memref<32xi32, #tpu.memory_space<smem>>) -> (i32, i32, i32) {
    %c0_i32 = arith.constant 0 : i32
    %c0_i32_0 = arith.constant 0 : i32
    %c0_i32_1 = arith.constant 0 : i32
    return %c0_i32, %arg0, %c0_i32_0 : i32, i32, i32
  }
}

</mosaic_0001>

<llo_original>
// kernel: tpu_custom_call.1
$region0: #{tpu_custom_call.1}
  #allocation0 [shape = 'u32[]', space=smem, size = 0x4, offset = 0x4, fixed_abs, tag = 'smem constant byte address 0x4 - core index']
  #allocation1 [shape = 'u32[144,128]{1,0:T(1,128)}', space=vmem, size = 0x12000, scoped, tag = 'internal scratch']
  #allocation2 [shape = 's32[1]{0}', space=sflag, size = 0x4, scoped, tag = 'scoped memory for tpu_custom_call.1']
  #allocation3 [shape = 'u8[512]{0}', space=smem, size = 0x200, scoped, tag = 'prefetched SMEM operand 0']
  %s0 = inlined_call_operand.hbm [shape: s32[32], index: 0, kind: input, shape index: {}]
  %s1 = inlined_call_operand.hbm [shape: s32[32,8,128], index: 1, kind: input, shape index: {}]
  %s2 = inlined_call_operand.hbm [shape: f32[9,8,128], index: 2, kind: output, shape index: {}]
  %s3 = sld [smem:[#allocation0]]
  $region25: #{tpu_custom_call.1} parent=0
    _
  %s5 = ssub.s32 1, %s3
  %s6 = scalar_select 0, %s5, %s3
  %8 = dma.hbm_to_smem %s0, 16, [#allocation3], [#allocation2]
  %9 = dma.done [#allocation2], 16
  %10 = sfence
  $region1: #{tpu_custom_call.1} parent=0
    #allocation4 [shape = 'u8[131072]{0}', space=vmem, size = 0x20000, scoped, tag = 'input window, operand 1, single buffered']
    #allocation5 [shape = 's32[1]{0}', space=sflag, size = 0x4, scoped, tag = 'scoped memory for tpu_custom_call.1']
    #allocation6 [shape = 's32[1]{0}', space=sflag, size = 0x4, scoped, tag = 'scoped memory for tpu_custom_call.1']
    #allocation7 [shape = 'u8[36864]{0}', space=vmem, size = 0x9000, scoped, tag = 'output window, operand 0, single buffered']
    %11 = vsyncpa [#allocation5], 0
    %12 = vsyncpa [#allocation6], 0
    // Predicated region
    $region2: #{tpu_custom_call.1} parent=1 // pred_check
      _
    $region3: #{tpu_custom_call.1} parent=1 // pred_check_branch
      %14 = sbr.rel (0) target = $region5
    $region4: #{tpu_custom_call.1} parent=1 // pred_region
      %s16 = ssub.s32 4096, 4096
      %17 = vsyncadd [#allocation5], %s16
      %s18 = sshll.u32 [#allocation4], 4
      %s19 = int_to_ptr.vmem [resolvable:$true] %s18
      %24 = dma.hbm_to_vmem [thread:$0]  %s1, 4096, %s19, [#allocation5], 128, 128, 8
    $region5: #{tpu_custom_call.1} parent=1 // pred_fallthru
      _
    // Predicated region
    $region6: #{tpu_custom_call.1} parent=1 // pred_check
      _
    $region7: #{tpu_custom_call.1} parent=1 // pred_check_branch
      %26 = sbr.rel (0) target = $region9
    $region8: #{tpu_custom_call.1} parent=1 // pred_region
      %27 = dma.done [#allocation5], 4096
    $region9: #{tpu_custom_call.1} parent=1 // pred_fallthru
      _
    %s28 = sld [smem:[#allocation3]]
    %s29 = smul.u32 %s28, 8
    %s30 = scalar_lea.vmem [#allocation4], %s29
    %v31 = vld [vmem:[%s30] sm:$0xff]
    %vm32 = vcmp.eq.s32.totalorder %v31, 0
    %v33 = vsel %vm32, 1, 0
    %vm34 = vcmp.eq.s32.totalorder %v31, 1
    %v35 = vsel %vm34, 1, 0
    %vm36 = vcmp.eq.s32.totalorder %v31, 2
    %vm37 = vcmp.eq.s32.totalorder %v31, 5
    %vm38 = vmor %vm36, %vm37
    %v39 = vsel %vm38, 1, 0
    %vm40 = vcmp.eq.s32.totalorder %v31, 3
    %v41 = vsel %vm40, 1, 0
    %vm42 = vcmp.eq.s32.totalorder %v31, 4
    %v43 = vsel %vm42, 1, 0
    %v44 = vadd.s32 %v33, %v41
    %v45 = vadd.s32 %v35, %v39
    %v46 = vadd.s32 %v45, %v41
    %v47 = vadd.s32 %v44, %v43
    %v48 = vadd.s32 %v39, %v43
    %v49 = vsub.s32 0, %v33
    %v50 = vadd.s32 %v49, %v35
    %v51 = vadd.s32 %v50, %v41
    %v52 = vsub.s32 %v35, %v39
    %v53 = vsub.s32 %v33, %v39
    %v54 = vsub.s32 %v53, %v41
    %v55 = vadd.s32 %v54, %v43
    %v56 = vsub.s32 0, %v39
    %v57 = vsub.s32 %v56, %v41
    loop: start=1, step=1, limit=32
    $region10: #{tpu_custom_call.1} parent=1 // loop_pre_header
      _
    $region11: #{tpu_custom_call.1} parent=1 // loop_header
      %s59 = sphi 1, %s63
      %p60 = scmp.ge.s32.totalorder %s59, 32
      %v64 = vphi %v44, %v107
      %v65 = vphi %v46, %v112
      %v66 = vphi %v47, %v117
      %v67 = vphi %v48, %v122
      %v68 = vphi %v49, %v127
      %v69 = vphi %v51, %v132
      %v70 = vphi %v52, %v137
      %v71 = vphi %v55, %v142
      %v72 = vphi %v57, %v147
    $region12: #{tpu_custom_call.1} parent=1 // loop_header_branch
      %62 = sbr.rel (%p60) target = $region16
    $region13: #{tpu_custom_call.1} parent=1 // loop_body
      %s73 = sld [smem:[#allocation3 + %s59]]
      %s74 = smul.u32 %s73, 8
      %s75 = scalar_lea.vmem [#allocation4], %s74
      %v76 = vld [vmem:[%s75] sm:$0xff]
      %vm77 = vcmp.eq.s32.totalorder %v76, 0
      %v78 = vsel %vm77, 1, 0
      %vm79 = vcmp.eq.s32.totalorder %v76, 1
      %v80 = vsel %vm79, 1, 0
      %vm81 = vcmp.eq.s32.totalorder %v76, 2
      %vm82 = vcmp.eq.s32.totalorder %v76, 5
      %vm83 = vmor %vm81, %vm82
      %v84 = vsel %vm83, 1, 0
      %vm85 = vcmp.eq.s32.totalorder %v76, 3
      %v86 = vsel %vm85, 1, 0
      %vm87 = vcmp.eq.s32.totalorder %v76, 4
      %v88 = vsel %vm87, 1, 0
      %v89 = vadd.s32 %v78, %v86
      %v90 = vadd.s32 %v80, %v84
      %v91 = vadd.s32 %v90, %v86
      %v92 = vadd.s32 %v89, %v88
      %v93 = vadd.s32 %v84, %v88
      %v94 = vsub.s32 0, %v78
      %v95 = vadd.s32 %v94, %v80
      %v96 = vadd.s32 %v95, %v86
      %v97 = vsub.s32 %v80, %v84
      %v98 = vsub.s32 %v78, %v84
      %v99 = vsub.s32 %v98, %v86
      %v100 = vadd.s32 %v99, %v88
      %v101 = vsub.s32 0, %v84
      %v102 = vsub.s32 %v101, %v86
      %v103 = vmul.u32 %v64, %v89
      %v104 = vmul.u32 %v65, %v93
      %v105 = vadd.s32 %v103, %v104
      %v106 = vmul.u32 %v66, %v97
      %v107 = vadd.s32 %v105, %v106
      %v108 = vmul.u32 %v64, %v91
      %v109 = vmul.u32 %v65, %v94
      %v110 = vadd.s32 %v108, %v109
      %v111 = vmul.u32 %v66, %v100
      %v112 = vadd.s32 %v110, %v111
      %v113 = vmul.u32 %v64, %v92
      %v114 = vmul.u32 %v65, %v96
      %v115 = vadd.s32 %v113, %v114
      %v116 = vmul.u32 %v66, %v102
      %v117 = vadd.s32 %v115, %v116
      %v118 = vmul.u32 %v67, %v89
      %v119 = vmul.u32 %v68, %v93
      %v120 = vadd.s32 %v118, %v119
      %v121 = vmul.u32 %v69, %v97
      %v122 = vadd.s32 %v120, %v121
      %v123 = vmul.u32 %v67, %v91
      %v124 = vmul.u32 %v68, %v94
      %v125 = vadd.s32 %v123, %v124
      %v126 = vmul.u32 %v69, %v100
      %v127 = vadd.s32 %v125, %v126
      %v128 = vmul.u32 %v67, %v92
      %v129 = vmul.u32 %v68, %v96
      %v130 = vadd.s32 %v128, %v129
      %v131 = vmul.u32 %v69, %v102
      %v132 = vadd.s32 %v130, %v131
      %v133 = vmul.u32 %v70, %v89
      %v134 = vmul.u32 %v71, %v93
      %v135 = vadd.s32 %v133, %v134
      %v136 = vmul.u32 %v72, %v97
      %v137 = vadd.s32 %v135, %v136
      %v138 = vmul.u32 %v70, %v91
      %v139 = vmul.u32 %v71, %v94
      %v140 = vadd.s32 %v138, %v139
      %v141 = vmul.u32 %v72, %v100
      %v142 = vadd.s32 %v140, %v141
      %v143 = vmul.u32 %v70, %v92
      %v144 = vmul.u32 %v71, %v96
      %v145 = vadd.s32 %v143, %v144
      %v146 = vmul.u32 %v72, %v102
      %v147 = vadd.s32 %v145, %v146
    $region14: #{tpu_custom_call.1} parent=1 // loop_footer
      %s63 = sadd.s32 1, %s59
    $region15: #{tpu_custom_call.1} parent=1 // loop_footer_branch
      %58 = sbr.rel target = $region11
    $region16: #{tpu_custom_call.1} parent=1 // loop_exit
      _
    %v148 = vcvt.s32.f32 %v64
    %149 = vst [vmem:[#allocation7] sm:$0xff] %v148
    %v150 = vcvt.s32.f32 %v65
    %s151 = scalar_lea.vmem [#allocation7], 8
    %152 = vst [vmem:[%s151] sm:$0xff] %v150
    %v153 = vcvt.s32.f32 %v66
    %s154 = scalar_lea.vmem [#allocation7], 16
    %155 = vst [vmem:[%s154] sm:$0xff] %v153
    %v156 = vcvt.s32.f32 %v67
    %s157 = scalar_lea.vmem [#allocation7], 24
    %158 = vst [vmem:[%s157] sm:$0xff] %v156
    %v159 = vcvt.s32.f32 %v68
    %s160 = scalar_lea.vmem [#allocation7], 32
    %161 = vst [vmem:[%s160] sm:$0xff] %v159
    %v162 = vcvt.s32.f32 %v69
    %s163 = scalar_lea.vmem [#allocation7], 40
    %164 = vst [vmem:[%s163] sm:$0xff] %v162
    %v165 = vcvt.s32.f32 %v70
    %s166 = scalar_lea.vmem [#allocation7], 48
    %167 = vst [vmem:[%s166] sm:$0xff] %v165
    %v168 = vcvt.s32.f32 %v71
    %s169 = scalar_lea.vmem [#allocation7], 56
    %170 = vst [vmem:[%s169] sm:$0xff] %v168
    %v171 = vcvt.s32.f32 %v72
    %s172 = scalar_lea.vmem [#allocation7], 64
    %173 = vst [vmem:[%s172] sm:$0xff] %v171
    // Predicated region
    $region17: #{tpu_custom_call.1} parent=1 // pred_check
      _
    $region18: #{tpu_custom_call.1} parent=1 // pred_check_branch
      %175 = sbr.rel (0) target = $region20
    $region19: #{tpu_custom_call.1} parent=1 // pred_region
      %s177 = ssub.s32 1152, 1152
      %178 = vsyncadd [#allocation6], %s177
      %s179 = sshll.u32 [#allocation7], 4
      %s180 = int_to_ptr.vmem [resolvable:$true] %s179
      %185 = dma.vmem_to_hbm [thread:$0]  %s180, 1152, %s2, [#allocation6], 128, 128, 8
    $region20: #{tpu_custom_call.1} parent=1 // pred_fallthru
      _
    // Predicated region
    $region21: #{tpu_custom_call.1} parent=1 // pred_check
      _
    $region22: #{tpu_custom_call.1} parent=1 // pred_check_branch
      %187 = sbr.rel (0) target = $region24
    $region23: #{tpu_custom_call.1} parent=1 // pred_region
      %188 = dma.done [#allocation6], 1152
    $region24: #{tpu_custom_call.1} parent=1 // pred_fallthru
      _
    %189 = vsyncpa [#allocation5], 1
    %190 = vsyncpa [#allocation6], 1

</llo_original>
